<compile_context>
chip_gen: v6e
topology: v6e:2x2x1
jax: 0.10.0
libtpu: 0.0.40
codegen_flags: <defaults>
</compile_context>

<pallas_src>
import math
import numpy as np
import jax
import jax.numpy as jnp
from jax.experimental import pallas as pl
from jax.experimental.pallas import tpu as pltpu

EMBEDDING_DIM = 32
HIDDEN_DIM = 32
NUM_ENTITY_TYPES = 8          # len(EntityType) is not defined in the source; fixed to 8
MIN_ENTITY_SCORE = 0.4
MAX_ENTITIES_PER_TEXT = 20
LN_EPS = 1e-5


def _round_up(n, m):
    return ((n + m - 1) // m) * m


# ----------------------------------------------------------------------------
# Shared in-kernel math: Linear -> LayerNorm -> GELU (exact erf form).
# Dropout is identity (eval mode).
# ----------------------------------------------------------------------------
def _hidden_act(x, w1, b1, gamma, beta):
    h = jnp.dot(x, w1, preferred_element_type=jnp.float32) + b1
    mean = jnp.mean(h, axis=-1, keepdims=True)
    var = jnp.mean(jnp.square(h - mean), axis=-1, keepdims=True)
    hn = (h - mean) * jax.lax.rsqrt(var + LN_EPS) * gamma + beta
    return 0.5 * hn * (1.0 + jax.lax.erf(hn * (1.0 / math.sqrt(2.0))))


# ----------------------------------------------------------------------------
# Kernel 1: token scorer head (Linear/LN/GELU/Linear(1)/Sigmoid) with the
# attention-mask multiply fused in.  Output is lane-dense: per-token scores
# for the tile are written as a (1, tm) row.
# ----------------------------------------------------------------------------
def _token_scorer_kernel(x_ref, mask_ref, w1_ref, b1_ref, g_ref, beta_ref,
                         w2_ref, b2_ref, o_ref):
    a = _hidden_act(x_ref[...].astype(jnp.float32), w1_ref[...], b1_ref[...],
                    g_ref[...], beta_ref[...])                        # (tm, H)
    # Second linear (out_features=1) computed lane-dense on the MXU:
    # (1, H) . (tm, H)^T -> (1, tm); token dim lands on the lane axis.
    y = jnp.einsum("rh,mh->rm", w2_ref[...], a,
                   preferred_element_type=jnp.float32)                # (1, tm)
    o_ref[...] = jax.nn.sigmoid(y + b2_ref[...]) * mask_ref[...]


def _token_scores_pallas(x2d, mask2d, w1, b1, gamma, beta, w2, b2, tm_max=4096):
    """x2d: [M, E] native dtype, mask2d: [1, M] -> masked scores [M]."""
    M, E = x2d.shape
    H = w1.shape[1]
    if M <= tm_max:
        tm = _round_up(M, 8)          # single tile; block == (padded) full extent
        grid = 1
    else:
        # Keep >= 2 grid steps so v7x megacore can shard the row axis; tm is a
        # multiple of 128 so the output blocks stay lane-dense / unmasked vst.
        tm = min(tm_max, _round_up(pl.cdiv(M, 2), 128))
        grid = pl.cdiv(M, tm)
    Mp = grid * tm                    # output/mask padded to whole tiles

    # The mask is tiny (4 B/token vs 128 B/token for x); padding it wrapper-side
    # keeps every mask/output block legal with no raggedness.
    mask_p = jnp.pad(mask2d.astype(jnp.float32), ((0, 0), (0, Mp - M)))

    # VMEM budget: double-buffered lane-padded (tm,128) x block + f32 temps.
    vmem_bytes = 2 * tm * 128 * 4 + 6 * tm * 128 * 4 + (2 << 20)
    vmem_limit = int(min(max(vmem_bytes, 16 << 20), 32 << 20))

    out = pl.pallas_call(
        _token_scorer_kernel,
        out_shape=jax.ShapeDtypeStruct((1, Mp), jnp.float32),
        grid=(grid,),
        in_specs=[
            pl.BlockSpec((tm, E), lambda i: (i, 0)),   # x rows (native dtype; ragged last block masked)
            pl.BlockSpec((1, tm), lambda i: (0, i)),   # attention mask, lane-dense
            pl.BlockSpec((E, H), lambda i: (0, 0)),    # W1   (constant block)
            pl.BlockSpec((1, H), lambda i: (0, 0)),    # b1
            pl.BlockSpec((1, H), lambda i: (0, 0)),    # LN gamma
            pl.BlockSpec((1, H), lambda i: (0, 0)),    # LN beta
            pl.BlockSpec((1, H), lambda i: (0, 0)),    # W2 as a single row
            pl.BlockSpec((1, 1), lambda i: (0, 0)),    # b2
        ],
        out_specs=pl.BlockSpec((1, tm), lambda i: (0, i)),   # lane-dense score row
        compiler_params=pltpu.CompilerParams(
            dimension_semantics=("parallel",),
            vmem_limit_bytes=vmem_limit,
        ),
    )(
        x2d,                                   # no wrapper-side upcast
        mask_p,
        w1.astype(jnp.float32),
        b1.reshape(1, H).astype(jnp.float32),
        gamma.reshape(1, H).astype(jnp.float32),
        beta.reshape(1, H).astype(jnp.float32),
        w2.reshape(1, H).astype(jnp.float32),
        b2.reshape(1, 1).astype(jnp.float32),
    )
    return out[0, :M]


@jax.jit
def _score_tokens(hidden_states, attention_mask, scorer_params):
    B, S, E = hidden_states.shape
    x2d = hidden_states.reshape(B * S, E)
    mask2d = attention_mask.reshape(1, B * S)
    scores = _token_scores_pallas(x2d, mask2d, *scorer_params).reshape(B, S)
    return scores


# ----------------------------------------------------------------------------
# Kernel 2: span mean-pooling + span_enhancer + type_classifier, gridded over
# the B*S contraction axis.  The pooling-matrix K-tile is built in-kernel from
# a tiny span table (no dense [Np, B*S] pool in HBM); span representations
# accumulate in a VMEM scratch; both heads run on the last grid step.
# ----------------------------------------------------------------------------
@jax.jit
def _entity_heads(span_start, span_end, span_invlen, hidden_states,
                  enh_params, cls_params):
    B, S, E = hidden_states.shape
    M = B * S
    x2d = hidden_states.reshape(M, E)
    Np = span_start.shape[0]

    w1e, b1e, ge, be_, w2e, b2e = enh_params
    w1t, b1t, gt, bt, w2t, b2t = cls_params
    H = w1e.shape[1]
    T = w2t.shape[1]

    tk_max = 2048
    tk = _round_up(M, 8) if M <= tk_max else tk_max
    grid = pl.cdiv(M, tk)
    ragged = (M % tk) != 0

    def kernel(start_ref, end_ref, invlen_ref, x_ref,
               w1e_ref, b1e_ref, ge_ref, be_ref, w2e_ref, b2e_ref,
               w1t_ref, b1t_ref, gt_ref, bt_ref, w2t_ref, b2t_ref,
               enh_ref, logit_ref, reps_acc):
        k = pl.program_id(0)

        @pl.when(k == 0)
        def _():
            reps_acc[...] = jnp.zeros_like(reps_acc)

        base = k * tk
        # Build this K-tile's slice of the span mean-pooling matrix on the fly.
        tok = base + jax.lax.broadcasted_iota(jnp.int32, (Np, tk), 1)
        pool = jnp.where((tok >= start_ref[...]) & (tok <= end_ref[...]),
                         invlen_ref[...], 0.0)                       # (Np, tk)

        x = x_ref[...].astype(jnp.float32)                           # (tk, E)
        if ragged:
            # Zero out the padded rows of the ragged last block (uninitialized
            # VMEM could be NaN; 0*NaN would contaminate the accumulator).
            row = base + jax.lax.broadcasted_iota(jnp.int32, (tk, 1), 0)
            x = jnp.where(row < M, x, 0.0)

        reps_acc[...] += jnp.dot(pool, x, preferred_element_type=jnp.float32)

        @pl.when(k == pl.num_programs(0) - 1)
        def _():
            reps = reps_acc[...]
            # span_enhancer head
            a_e = _hidden_act(reps, w1e_ref[...], b1e_ref[...], ge_ref[...], be_ref[...])
            enhanced = jnp.dot(a_e, w2e_ref[...],
                               preferred_element_type=jnp.float32) + b2e_ref[...]
            enh_ref[...] = enhanced.astype(enh_ref.dtype)
            # type_classifier applied to the enhanced representations (matches PyTorch)
            a_t = _hidden_act(enhanced, w1t_ref[...], b1t_ref[...], gt_ref[...], bt_ref[...])
            logit_ref[...] = (jnp.dot(a_t, w2t_ref[...],
                                      preferred_element_type=jnp.float32)
                              + b2t_ref[...]).astype(logit_ref.dtype)

    vmem_bytes = 2 * tk * 128 * 4 + 4 * Np * tk * 4 + (2 << 20)
    vmem_limit = int(min(max(vmem_bytes, 16 << 20), 32 << 20))

    const = lambda k: (0, 0)
    enhanced, logits = pl.pallas_call(
        kernel,
        out_shape=(jax.ShapeDtypeStruct((Np, E), jnp.float32),
                   jax.ShapeDtypeStruct((Np, T), jnp.float32)),
        grid=(grid,),
        in_specs=[
            pl.BlockSpec((Np, 1), const),            # span start (flat)
            pl.BlockSpec((Np, 1), const),            # span end (flat, inclusive)
            pl.BlockSpec((Np, 1), const),            # 1 / span length
            pl.BlockSpec((tk, E), lambda k: (k, 0)),  # hidden states K-tile
            pl.BlockSpec((E, H), const), pl.BlockSpec((1, H), const),
            pl.BlockSpec((1, H), const), pl.BlockSpec((1, H), const),
            pl.BlockSpec((H, E), const), pl.BlockSpec((1, E), const),
            pl.BlockSpec((E, H), const), pl.BlockSpec((1, H), const),
            pl.BlockSpec((1, H), const), pl.BlockSpec((1, H), const),
            pl.BlockSpec((H, T), const), pl.BlockSpec((1, T), const),
        ],
        out_specs=(pl.BlockSpec((Np, E), const),
                   pl.BlockSpec((Np, T), const)),
        scratch_shapes=[pltpu.VMEM((Np, E), jnp.float32)],
        compiler_params=pltpu.CompilerParams(
            dimension_semantics=("arbitrary",),
            vmem_limit_bytes=vmem_limit,
        ),
    )(
        span_start, span_end, span_invlen, x2d,
        w1e.astype(jnp.float32), b1e.reshape(1, H).astype(jnp.float32),
        ge.reshape(1, H).astype(jnp.float32), be_.reshape(1, H).astype(jnp.float32),
        w2e.astype(jnp.float32), b2e.reshape(1, E).astype(jnp.float32),
        w1t.astype(jnp.float32), b1t.reshape(1, H).astype(jnp.float32),
        gt.reshape(1, H).astype(jnp.float32), bt.reshape(1, H).astype(jnp.float32),
        w2t.astype(jnp.float32), b2t.reshape(1, T).astype(jnp.float32),
    )
    return enhanced, logits


# ----------------------------------------------------------------------------
# Parameter initialization (deterministic, PyTorch-Linear-style uniform init).
# NOTE: weights are stored (fan_in, fan_out) and used as x @ W; importing real
# PyTorch nn.Linear weights requires a transpose of their (out, in) layout.
# ----------------------------------------------------------------------------
def _init_linear(key, fan_in, fan_out):
    kw, kb = jax.random.split(key)
    bound = 1.0 / math.sqrt(fan_in)
    w = jax.random.uniform(kw, (fan_in, fan_out), jnp.float32, -bound, bound)
    b = jax.random.uniform(kb, (fan_out,), jnp.float32, -bound, bound)
    return w, b


def _init_head(key, in_dim, hidden_dim, out_dim):
    k1, k2 = jax.random.split(key)
    w1, b1 = _init_linear(k1, in_dim, hidden_dim)
    gamma = jnp.ones((hidden_dim,), jnp.float32)
    beta = jnp.zeros((hidden_dim,), jnp.float32)
    w2, b2 = _init_linear(k2, hidden_dim, out_dim)
    return (w1, b1, gamma, beta, w2, b2)


def init_entity_extractor_params(key, embedding_dim=EMBEDDING_DIM, hidden_dim=HIDDEN_DIM,
                                 num_types=NUM_ENTITY_TYPES):
    ks, kt, ke = jax.random.split(key, 3)
    return {
        "entity_scorer": _init_head(ks, embedding_dim, hidden_dim, 1),
        "type_classifier": _init_head(kt, embedding_dim, hidden_dim, num_types),
        "span_enhancer": _init_head(ke, embedding_dim, hidden_dim, embedding_dim),
    }


# ----------------------------------------------------------------------------
# Host-side, data-dependent span extraction (mirrors the PyTorch Python loop).
# TODO(synk): dynamic per-token control flow (.item() driven) has no clean
#             static Pallas formulation; it runs on host over the kernel output.
# ----------------------------------------------------------------------------
def _extract_spans(scores_np, mask_np, min_score, max_per_text):
    batch_size, seq_len = scores_np.shape
    entity_spans = []
    for b in range(batch_size):
        scores = scores_np[b]
        mask = mask_np[b]
        in_entity = False
        start_idx = 0
        current = []
        for i in range(seq_len):
            if mask[i] == 0:
                if in_entity:
                    end_idx = i - 1
                    if end_idx >= start_idx:
                        avg = sum(current) / len(current)
                        if avg >= min_score:
                            entity_spans.append((b, start_idx, end_idx, avg))
                    in_entity = False
                continue
            if scores[i] >= min_score:
                if not in_entity:
                    start_idx = i
                    current = [float(scores[i])]
                    in_entity = True
                else:
                    current.append(float(scores[i]))
            elif in_entity:
                end_idx = i - 1
                if end_idx >= start_idx:
                    avg = sum(current) / len(current)
                    if avg >= min_score:
                        entity_spans.append((b, start_idx, end_idx, avg))
                in_entity = False
        if in_entity:
            end_idx = seq_len - 1
            avg = sum(current) / len(current)
            if avg >= min_score:
                entity_spans.append((b, start_idx, end_idx, avg))
    filtered, counts = [], {}
    for span in sorted(entity_spans, key=lambda x: x[3], reverse=True):
        bi = span[0]
        counts.setdefault(bi, 0)
        if counts[bi] < max_per_text:
            filtered.append(span)
            counts[bi] += 1
    return filtered


# ----------------------------------------------------------------------------
# Full forward pass
# ----------------------------------------------------------------------------
def entity_extractor_forward(params, hidden_states, attention_mask=None):
    B, S, E = hidden_states.shape
    if attention_mask is None:
        attention_mask = jnp.ones((B, S), jnp.float32)

    # Stage 1: token scoring (Pallas, mask fused), then one host sync for the
    # data-dependent span logic.
    token_scores = _score_tokens(hidden_states, attention_mask, params["entity_scorer"])
    scores_np = np.asarray(jax.device_get(token_scores))
    mask_np = np.asarray(jax.device_get(attention_mask))
    spans = _extract_spans(scores_np, mask_np, MIN_ENTITY_SCORE, MAX_ENTITIES_PER_TEXT)

    n = len(spans)
    if n == 0:
        return {
            "entity_spans": spans,
            "entity_representations": jnp.zeros((0, E), jnp.float32),
            "entity_scores": jnp.zeros((0,), jnp.float32),
            "entity_types": jnp.zeros((0,), jnp.int32),
            "entity_type_probs": jnp.zeros((0, NUM_ENTITY_TYPES), jnp.float32),
            "token_entity_scores": token_scores,
        }

    # Stage 2: ship a tiny span table (start / end / 1/len), rows padded to a
    # multiple of 8 with never-matching sentinels (pooled reps come out zero
    # and are sliced off).  The pooling matrix itself is built on-device
    # inside the gridded Pallas kernel.
    Np = max(_round_up(n, 8), 8)
    start = np.full((Np, 1), -1, np.int32)
    end = np.full((Np, 1), -2, np.int32)
    invlen = np.zeros((Np, 1), np.float32)
    for r, (b, s0, e0, _) in enumerate(spans):
        start[r, 0] = b * S + s0
        end[r, 0] = b * S + e0
        invlen[r, 0] = 1.0 / float(e0 - s0 + 1)

    enhanced_p, logits_p = _entity_heads(
        jnp.asarray(start), jnp.asarray(end), jnp.asarray(invlen),
        hidden_states, params["span_enhancer"], params["type_classifier"])
    enhanced = enhanced_p[:n]
    type_logits = logits_p[:n]

    entity_scores = jnp.asarray([sc for (_, _, _, sc) in spans], dtype=jnp.float32)
    entity_type_probs = jax.nn.softmax(type_logits, axis=-1)
    entity_types = jnp.argmax(type_logits, axis=-1)

    return {
        "entity_spans": spans,
        "entity_representations": enhanced,
        "entity_scores": entity_scores,
        "entity_types": entity_types,
        "entity_type_probs": entity_type_probs,
        "token_entity_scores": token_scores,
    }


if __name__ == "__main__":
    key = jax.random.PRNGKey(0)
    kp, kx = jax.random.split(key)

    B, S, E = 2, 8, EMBEDDING_DIM
    params = init_entity_extractor_params(kp)
    hidden_states = jax.random.normal(kx, (B, S, E), jnp.float32)
    attention_mask = jnp.ones((B, S), jnp.float32).at[1, -2:].set(0.0)

    out = entity_extractor_forward(params, hidden_states, attention_mask)
    jax.block_until_ready(out["token_entity_scores"])
    jax.block_until_ready(out["entity_representations"])
    jax.block_until_ready(out["entity_type_probs"])
    print("KERNEL_OK")
</pallas_src>

<mosaic_0001>
module attributes {stable_mosaic.version = 11 : i64} {
  func.func @_token_scorer_kernel(%arg0: i32, %arg1: memref<16x32xf32, #tpu.memory_space<vmem>>, %arg2: memref<1x16xf32, #tpu.memory_space<vmem>>, %arg3: memref<32x32xf32, #tpu.memory_space<vmem>>, %arg4: memref<1x32xf32, #tpu.memory_space<vmem>>, %arg5: memref<1x32xf32, #tpu.memory_space<vmem>>, %arg6: memref<1x32xf32, #tpu.memory_space<vmem>>, %arg7: memref<1x32xf32, #tpu.memory_space<vmem>>, %arg8: memref<1x1xf32, #tpu.memory_space<vmem>>, %arg9: memref<1x16xf32, #tpu.memory_space<vmem>>) attributes {dimension_semantics = [#tpu.dimension_semantics<parallel>], iteration_bounds = array<i64: 1>, scalar_prefetch = 0 : i64, scratch_operands = 0 : i64, tpu.core_type = #tpu.core_type<tc>, window_params = [{transform_indices = @transform_0, window_bounds = array<i64: 16, 32>}, {transform_indices = @transform_1, window_bounds = array<i64: 1, 16>}, {pipeline_mode = #tpu.pipeline_mode<synchronous>, transform_indices = @transform_2, window_bounds = array<i64: 32, 32>}, {pipeline_mode = #tpu.pipeline_mode<synchronous>, transform_indices = @transform_3, window_bounds = array<i64: 1, 32>}, {pipeline_mode = #tpu.pipeline_mode<synchronous>, transform_indices = @transform_4, window_bounds = array<i64: 1, 32>}, {pipeline_mode = #tpu.pipeline_mode<synchronous>, transform_indices = @transform_5, window_bounds = array<i64: 1, 32>}, {pipeline_mode = #tpu.pipeline_mode<synchronous>, transform_indices = @transform_6, window_bounds = array<i64: 1, 32>}, {pipeline_mode = #tpu.pipeline_mode<synchronous>, transform_indices = @transform_7, window_bounds = array<i64: 1, 1>}, {transform_indices = @transform_8, window_bounds = array<i64: 1, 16>}]} {
    %c0 = arith.constant 0 : index
    %c0_0 = arith.constant 0 : index
    %0 = vector.load %arg1[%c0, %c0_0] : memref<16x32xf32, #tpu.memory_space<vmem>>, vector<16x32xf32>
    %c0_1 = arith.constant 0 : index
    %c0_2 = arith.constant 0 : index
    %1 = vector.load %arg3[%c0_1, %c0_2] : memref<32x32xf32, #tpu.memory_space<vmem>>, vector<32x32xf32>
    %c0_3 = arith.constant 0 : index
    %c0_4 = arith.constant 0 : index
    %2 = vector.load %arg4[%c0_3, %c0_4] : memref<1x32xf32, #tpu.memory_space<vmem>>, vector<1x32xf32>
    %c0_5 = arith.constant 0 : index
    %c0_6 = arith.constant 0 : index
    %3 = vector.load %arg5[%c0_5, %c0_6] : memref<1x32xf32, #tpu.memory_space<vmem>>, vector<1x32xf32>
    %c0_7 = arith.constant 0 : index
    %c0_8 = arith.constant 0 : index
    %4 = vector.load %arg6[%c0_7, %c0_8] : memref<1x32xf32, #tpu.memory_space<vmem>>, vector<1x32xf32>
    %cst = arith.constant dense<0.000000e+00> : vector<16x32xf32>
    %5 = tpu.matmul %0, %1, %cst {dimension_numbers = #tpu.dot_dimension_numbers<[1], [0], [0], [1], [0, 0, 1, 1], [], []>} : vector<16x32xf32>, vector<32x32xf32>, vector<16x32xf32> -> vector<16x32xf32>
    %6 = vector.broadcast %2 : vector<1x32xf32> to vector<16x32xf32>
    %7 = arith.addf %5, %6 : vector<16x32xf32>
    %cst_9 = arith.constant dense<0.000000e+00> : vector<16xf32>
    %8 = vector.multi_reduction <add>, %7, %cst_9 [1] : vector<16x32xf32> to vector<16xf32>
    %9 = vector.shape_cast %8 : vector<16xf32> to vector<16x1xf32>
    %cst_10 = arith.constant 3.200000e+01 : f32
    %10 = vector.broadcast %cst_10 : f32 to vector<16x1xf32>
    %11 = arith.divf %9, %10 : vector<16x1xf32>
    %12 = vector.broadcast %11 : vector<16x1xf32> to vector<16x32xf32>
    %13 = arith.subf %7, %12 : vector<16x32xf32>
    %14 = arith.mulf %13, %13 : vector<16x32xf32>
    %cst_11 = arith.constant dense<0.000000e+00> : vector<16xf32>
    %15 = vector.multi_reduction <add>, %14, %cst_11 [1] : vector<16x32xf32> to vector<16xf32>
    %16 = vector.shape_cast %15 : vector<16xf32> to vector<16x1xf32>
    %cst_12 = arith.constant 3.200000e+01 : f32
    %17 = vector.broadcast %cst_12 : f32 to vector<16x1xf32>
    %18 = arith.divf %16, %17 : vector<16x1xf32>
    %19 = vector.broadcast %11 : vector<16x1xf32> to vector<16x32xf32>
    %20 = arith.subf %7, %19 : vector<16x32xf32>
    %cst_13 = arith.constant 9.99999974E-6 : f32
    %21 = vector.broadcast %cst_13 : f32 to vector<16x1xf32>
    %22 = arith.addf %18, %21 : vector<16x1xf32>
    %23 = math.rsqrt %22 : vector<16x1xf32>
    %24 = vector.broadcast %23 : vector<16x1xf32> to vector<16x32xf32>
    %25 = arith.mulf %20, %24 : vector<16x32xf32>
    %26 = vector.broadcast %3 : vector<1x32xf32> to vector<16x32xf32>
    %27 = arith.mulf %25, %26 : vector<16x32xf32>
    %28 = vector.broadcast %4 : vector<1x32xf32> to vector<16x32xf32>
    %29 = arith.addf %27, %28 : vector<16x32xf32>
    %cst_14 = arith.constant 5.000000e-01 : f32
    %30 = vector.broadcast %cst_14 : f32 to vector<16x32xf32>
    %31 = arith.mulf %30, %29 : vector<16x32xf32>
    %cst_15 = arith.constant 0.707106769 : f32
    %32 = vector.broadcast %cst_15 : f32 to vector<16x32xf32>
    %33 = arith.mulf %29, %32 : vector<16x32xf32>
    %34 = math.erf %33 : vector<16x32xf32>
    %cst_16 = arith.constant 1.000000e+00 : f32
    %35 = vector.broadcast %cst_16 : f32 to vector<16x32xf32>
    %36 = arith.addf %35, %34 : vector<16x32xf32>
    %37 = arith.mulf %31, %36 : vector<16x32xf32>
    %c0_17 = arith.constant 0 : index
    %c0_18 = arith.constant 0 : index
    %38 = vector.load %arg7[%c0_17, %c0_18] : memref<1x32xf32, #tpu.memory_space<vmem>>, vector<1x32xf32>
    "tpu.trace_start"() <{level = 10 : i32, message = "rh,mh->rm"}> : () -> ()
    %cst_19 = arith.constant dense<0.000000e+00> : vector<1x16xf32>
    %39 = tpu.matmul %38, %37, %cst_19 {dimension_numbers = #tpu.dot_dimension_numbers<[1], [1], [0], [0], [0, 0, 1, 0], [], []>} : vector<1x32xf32>, vector<16x32xf32>, vector<1x16xf32> -> vector<1x16xf32>
    "tpu.trace_stop"() : () -> ()
    %c0_20 = arith.constant 0 : index
    %c0_21 = arith.constant 0 : index
    %40 = vector.load %arg8[%c0_20, %c0_21] : memref<1x1xf32, #tpu.memory_space<vmem>>, vector<1x1xf32>
    %41 = vector.broadcast %40 : vector<1x1xf32> to vector<1x16xf32>
    %42 = arith.addf %39, %41 : vector<1x16xf32>
    %43 = arith.negf %42 : vector<1x16xf32>
    %44 = math.exp %43 : vector<1x16xf32>
    %cst_22 = arith.constant 1.000000e+00 : f32
    %45 = vector.broadcast %cst_22 : f32 to vector<1x16xf32>
    %46 = arith.addf %45, %44 : vector<1x16xf32>
    %47 = arith.divf %45, %46 : vector<1x16xf32>
    %c0_23 = arith.constant 0 : index
    %c0_24 = arith.constant 0 : index
    %48 = vector.load %arg2[%c0_23, %c0_24] : memref<1x16xf32, #tpu.memory_space<vmem>>, vector<1x16xf32>
    %49 = arith.mulf %47, %48 : vector<1x16xf32>
    %c0_25 = arith.constant 0 : index
    %c0_26 = arith.constant 0 : index
    %50 = vector.load %arg9[%c0_25, %c0_26] : memref<1x16xf32, #tpu.memory_space<vmem>>, vector<1x16xf32>
    tpu.vector_store %arg9[%c0_25, %c0_26], %49 {strides = array<i32>} : memref<1x16xf32, #tpu.memory_space<vmem>>, vector<1x16xf32>,
    return
  }
  func.func @transform_0(%arg0: i32) -> (i32, i32) {
    %c0_i32 = arith.constant 0 : i32
    %c0_i32_0 = arith.constant 0 : i32
    return %arg0, %c0_i32 : i32, i32
  }
  func.func @transform_1(%arg0: i32) -> (i32, i32) {
    %c0_i32 = arith.constant 0 : i32
    %c0_i32_0 = arith.constant 0 : i32
    return %c0_i32, %arg0 : i32, i32
  }
  func.func @transform_2(%arg0: i32) -> (i32, i32) {
    %c0_i32 = arith.constant 0 : i32
    %c0_i32_0 = arith.constant 0 : i32
    %c0_i32_1 = arith.constant 0 : i32
    return %c0_i32, %c0_i32_0 : i32, i32
  }
  func.func @transform_3(%arg0: i32) -> (i32, i32) {
    %c0_i32 = arith.constant 0 : i32
    %c0_i32_0 = arith.constant 0 : i32
    %c0_i32_1 = arith.constant 0 : i32
    return %c0_i32, %c0_i32_0 : i32, i32
  }
  func.func @transform_4(%arg0: i32) -> (i32, i32) {
    %c0_i32 = arith.constant 0 : i32
    %c0_i32_0 = arith.constant 0 : i32
    %c0_i32_1 = arith.constant 0 : i32
    return %c0_i32, %c0_i32_0 : i32, i32
  }
  func.func @transform_5(%arg0: i32) -> (i32, i32) {
    %c0_i32 = arith.constant 0 : i32
    %c0_i32_0 = arith.constant 0 : i32
    %c0_i32_1 = arith.constant 0 : i32
    return %c0_i32, %c0_i32_0 : i32, i32
  }
  func.func @transform_6(%arg0: i32) -> (i32, i32) {
    %c0_i32 = arith.constant 0 : i32
    %c0_i32_0 = arith.constant 0 : i32
    %c0_i32_1 = arith.constant 0 : i32
    return %c0_i32, %c0_i32_0 : i32, i32
  }
  func.func @transform_7(%arg0: i32) -> (i32, i32) {
    %c0_i32 = arith.constant 0 : i32
    %c0_i32_0 = arith.constant 0 : i32
    %c0_i32_1 = arith.constant 0 : i32
    return %c0_i32, %c0_i32_0 : i32, i32
  }
  func.func @transform_8(%arg0: i32) -> (i32, i32) {
    %c0_i32 = arith.constant 0 : i32
    %c0_i32_0 = arith.constant 0 : i32
    return %c0_i32, %arg0 : i32, i32
  }
}

</mosaic_0001>

<llo_original>
// kernel: squeeze.1
$region0: #{squeeze.1}
  %s0 = inlined_call_operand.vmem [shape: f32[16], index: 0, kind: input, shape index: {}]
  %s1 = inlined_call_operand.hbm [shape: f32[2,8], index: 1, kind: output, shape index: {}]
  $region1: #{squeeze.1} parent=0
    #allocation0 [shape = 'u8[1024]{0}', space=vmem, size = 0x400, scoped, tag = 'operand span for operand 1']
    #allocation1 [shape = 's32[1]{0}', space=sflag, size = 0x4, scoped, tag = 'scoped memory for squeeze.1']
    #allocation2 [shape = 'u8[4096]{0}', space=vmem, size = 0x1000, scoped, tag = 'scoped mem for output reshape']
    #allocation3 [shape = 'u8[4096]{0}', space=vmem, size = 0x1000, scoped, tag = 'scoped mem for input reshape']
    %2 = vsyncpa [#allocation1], 0
    %s4 = sshll.u32 1, 1
    %s5 = ssub.s32 %s4, 1
    %v6 = vld [vmem:[%s0] sm:%s5]
    %7 = vst [vmem:[#allocation3] sm:%s5] %v6
    %v8 = vld [vmem:[#allocation3] sm:$0x1]
    %vm9 = vcmask 64512
    %10 = vst.msk [vmem:[#allocation2] sm:$0x1] %vm9, %v8
    %v11 = vld [vmem:[#allocation3] sm:$0x1]
    %12 = vrot.lane.b32.xlu0 %v11, 120
    %v13 = vpop.permute.xlu0 %12
    %vm14 = vcmask 64512
    %s15 = scalar_lea.vmem [#allocation2], 1
    %16 = vst.msk [vmem:[%s15] sm:$0x1] %vm14, %v13
    %s18 = sshll.u32 1, 2
    %s19 = ssub.s32 %s18, 1
    %v21 = vld [vmem:[#allocation2] sm:%s19]
    %s22 = sshll.u32 1, 2
    %s23 = ssub.s32 %s22, 1
    %24 = vst [vmem:[#allocation0] sm:%s23] %v21
    %s26 = ssub.s32 32, 32
    %27 = vsyncadd [#allocation1], %s26
    %s29 = sshll.u32 [#allocation0], 4
    %s30 = int_to_ptr.vmem [resolvable:$true] %s29
    %32 = dma.vmem_to_hbm [thread:$0]  %s30, 32, %s1, [#allocation1]
    %33 = dma.done [#allocation1], 32
    %34 = vsyncpa [#allocation1], 1

// kernel: _score_tokens.1
$region0: #{_score_tokens.1}
  #allocation0 [shape = 'u32[]', space=smem, size = 0x4, offset = 0x4, fixed_abs, tag = 'smem constant byte address 0x4 - core index']
  #allocation1 [shape = 'u32[144,128]{1,0:T(1,128)}', space=vmem, size = 0x12000, scoped, tag = 'internal scratch']
  #allocation2 [shape = 'f32[1,1]{1,0:T(1,128)S(1)}', space=vmem, size = 0x200, scoped, tag = 'scoped memory for _score_tokens.1']
  %s0 = inlined_call_operand.vmem [shape: f32[16,32], index: 0, kind: input, shape index: {}]
  %s1 = inlined_call_operand.vmem [shape: f32[1,16], index: 1, kind: input, shape index: {}]
  %s2 = inlined_call_operand.hbm [shape: f32[32,32], index: 2, kind: input, shape index: {}]
  %s3 = inlined_call_operand.vmem [shape: f32[1,32], index: 3, kind: input, shape index: {}]
  %s4 = inlined_call_operand.vmem [shape: f32[1,32], index: 4, kind: input, shape index: {}]
  %s5 = inlined_call_operand.vmem [shape: f32[1,32], index: 5, kind: input, shape index: {}]
  %s6 = inlined_call_operand.vmem [shape: f32[1,32], index: 6, kind: input, shape index: {}]
  %s7 = inlined_call_operand.<no memory space> [shape: f32[1,1], index: 7, kind: input, shape index: {}]
  %s8 = inlined_call_operand.vmem [shape: f32[1,16], index: 8, kind: output, shape index: {}]
  %s9 = sld [smem:[#allocation0]]
  $region46: #{_score_tokens.1} parent=0
    _
  %s11 = ssub.s32 1, %s9
  %s12 = scalar_select 0, %s11, %s9
  %v13 = vstv %s7
  %14 = vst [vmem:[#allocation2] sm:$0x1] %v13
  $region1: #{_score_tokens.1} parent=0
    #allocation3 [shape = 'u8[16384]{0}', space=vmem, size = 0x4000, scoped, tag = 'input window, operand 2, single buffered']
    #allocation4 [shape = 's32[1]{0}', space=sflag, size = 0x4, scoped, tag = 'scoped memory for _score_tokens.1']
    %15 = vsyncpa [#allocation4], 0
    // Predicated region
    $region2: #{_score_tokens.1} parent=1 // pred_check
      _
    $region3: #{_score_tokens.1} parent=1 // pred_check_branch
      %17 = sbr.rel (0) target = $region5
    $region4: #{_score_tokens.1} parent=1 // pred_region
      _
    $region5: #{_score_tokens.1} parent=1 // pred_fallthru
      _
    // Predicated region
    $region6: #{_score_tokens.1} parent=1 // pred_check
      _
    $region7: #{_score_tokens.1} parent=1 // pred_check_branch
      %19 = sbr.rel (0) target = $region9
    $region8: #{_score_tokens.1} parent=1 // pred_region
      _
    $region9: #{_score_tokens.1} parent=1 // pred_fallthru
      _
    // Predicated region
    $region10: #{_score_tokens.1} parent=1 // pred_check
      _
    $region11: #{_score_tokens.1} parent=1 // pred_check_branch
      %21 = sbr.rel (0) target = $region13
    $region12: #{_score_tokens.1} parent=1 // pred_region
      %s23 = ssub.s32 512, 512
      %24 = vsyncadd [#allocation4], %s23
      %s25 = sshll.u32 [#allocation3], 4
      %s26 = int_to_ptr.vmem [resolvable:$true] %s25
      %31 = dma.hbm_to_vmem [thread:$0]  %s2, 512, %s26, [#allocation4], 128, 128, 8
    $region13: #{_score_tokens.1} parent=1 // pred_fallthru
      _
    // Predicated region
    $region14: #{_score_tokens.1} parent=1 // pred_check
      _
    $region15: #{_score_tokens.1} parent=1 // pred_check_branch
      %33 = sbr.rel (0) target = $region17
    $region16: #{_score_tokens.1} parent=1 // pred_region
      _
    $region17: #{_score_tokens.1} parent=1 // pred_fallthru
      _
    // Predicated region
    $region18: #{_score_tokens.1} parent=1 // pred_check
      _
    $region19: #{_score_tokens.1} parent=1 // pred_check_branch
      %35 = sbr.rel (0) target = $region21
    $region20: #{_score_tokens.1} parent=1 // pred_region
      _
    $region21: #{_score_tokens.1} parent=1 // pred_fallthru
      _
    // Predicated region
    $region22: #{_score_tokens.1} parent=1 // pred_check
      _
    $region23: #{_score_tokens.1} parent=1 // pred_check_branch
      %37 = sbr.rel (0) target = $region25
    $region24: #{_score_tokens.1} parent=1 // pred_region
      _
    $region25: #{_score_tokens.1} parent=1 // pred_fallthru
      _
    // Predicated region
    $region26: #{_score_tokens.1} parent=1 // pred_check
      _
    $region27: #{_score_tokens.1} parent=1 // pred_check_branch
      %39 = sbr.rel (0) target = $region29
    $region28: #{_score_tokens.1} parent=1 // pred_region
      _
    $region29: #{_score_tokens.1} parent=1 // pred_fallthru
      _
    // Predicated region
    $region30: #{_score_tokens.1} parent=1 // pred_check
      _
    $region31: #{_score_tokens.1} parent=1 // pred_check_branch
      %41 = sbr.rel (0) target = $region33
    $region32: #{_score_tokens.1} parent=1 // pred_region
      _
    $region33: #{_score_tokens.1} parent=1 // pred_fallthru
      _
    // Predicated region
    $region34: #{_score_tokens.1} parent=1 // pred_check
      _
    $region35: #{_score_tokens.1} parent=1 // pred_check_branch
      %43 = sbr.rel (0) target = $region37
    $region36: #{_score_tokens.1} parent=1 // pred_region
      %44 = dma.done [#allocation4], 512
    $region37: #{_score_tokens.1} parent=1 // pred_fallthru
      _
    %v45 = vld [vmem:[%s0] sm:$0xff]
    %v46 = vld [vmem:[%s0 + $0x8] sm:$0xff]
    %v47 = vld [vmem:[#allocation3] sm:$0xff]
    %v48 = vld [vmem:[#allocation3 + $0x8] sm:$0xff]
    %v49 = vld [vmem:[#allocation3 + $0x10] sm:$0xff]
    %v50 = vld [vmem:[#allocation3 + $0x18] sm:$0xff]
    %v51 = vld [vmem:[%s3] sm:$0x1]
    %v52 = vld [vmem:[%s4] sm:$0x1]
    %v53 = vld [vmem:[%s5] sm:$0x1]
    %v55 = vlaneseq
    %v56 = vshrl.u32 %v55, 7
    %v57 = vsub.s32 0, %v56
    %v58 = vrot.slane %v51, %v57
    %vm60 = vcmask 261120
    %v62 = vsel %vm60, %v45, 0
    %v65 = vsel %vm60, %v46, 0
    %67 = vmatprep.subr.mxu0 0.0
    %68 = vmatpush1.msra.mxu0 0.0
    %69 = vmatprep.subr.mxu0 0.0
    %70 = vmatpush1.msra.mxu0 0.0
    %71 = vmatprep.subr.mxu0 0.0
    %72 = vmatpush1.msra.mxu0 0.0
    %73 = vmatprep.subr.mxu0 0.0
    %74 = vmatpush1.msra.mxu0 0.0
    %75 = vmatprep.subr.mxu0 0.0
    %76 = vmatpush1.msra.mxu0 0.0
    %77 = vmatprep.subr.mxu0 0.0
    %78 = vmatpush1.msra.mxu0 0.0
    %79 = vmatprep.subr.mxu0 0.0
    %80 = vmatpush1.msra.mxu0 0.0
    %81 = vmatprep.subr.mxu0 0.0
    %82 = vmatpush1.msra.mxu0 0.0
    %83 = vmatprep.subr.mxu0 0.0
    %84 = vmatpush1.msra.mxu0 0.0
    %85 = vmatprep.subr.mxu0 0.0
    %86 = vmatpush1.msra.mxu0 0.0
    %87 = vmatprep.subr.mxu0 0.0
    %88 = vmatpush1.msra.mxu0 0.0
    %89 = vmatprep.subr.mxu0 0.0
    %90 = vmatpush1.msra.mxu0 0.0
    %91 = vmatprep.subr.mxu0 0.0
    %92 = vmatpush1.msra.mxu0 %v50
    %93 = vmatprep.subr.mxu0 0.0
    %94 = vmatpush1.msra.mxu0 %v49
    %95 = vmatprep.subr.mxu0 0.0
    %96 = vmatpush1.msra.mxu0 %v48
    %97 = vmatprep.subr.mxu0 0.0
    %98 = vmatpush1.msra.mxu0 %v47
    %99 = vmatprep.subr.mxu0 0.0
    %100 = vmatpush2.msra.mxu0 0.0
    %101 = vmatprep.subr.mxu0 0.0
    %102 = vmatpush2.msra.mxu0 0.0
    %103 = vmatprep.subr.mxu0 0.0
    %104 = vmatpush2.msra.mxu0 0.0
    %105 = vmatprep.subr.mxu0 0.0
    %106 = vmatpush2.msra.mxu0 0.0
    %107 = vmatprep.subr.mxu0 0.0
    %108 = vmatpush2.msra.mxu0 0.0
    %109 = vmatprep.subr.mxu0 0.0
    %110 = vmatpush2.msra.mxu0 0.0
    %111 = vmatprep.subr.mxu0 0.0
    %112 = vmatpush2.msra.mxu0 0.0
    %113 = vmatprep.subr.mxu0 0.0
    %114 = vmatpush2.msra.mxu0 0.0
    %115 = vmatprep.subr.mxu0 0.0
    %116 = vmatpush2.msra.mxu0 0.0
    %117 = vmatprep.subr.mxu0 0.0
    %118 = vmatpush2.msra.mxu0 0.0
    %119 = vmatprep.subr.mxu0 0.0
    %120 = vmatpush2.msra.mxu0 0.0
    %121 = vmatprep.subr.mxu0 0.0
    %122 = vmatpush2.msra.mxu0 0.0
    %123 = vmatprep.subr.mxu0 0.0
    %124 = vmatpush2.msra.mxu0 0.0
    %125 = vmatprep.subr.mxu0 0.0
    %126 = vmatpush2.msra.mxu0 0.0
    %127 = vmatprep.subr.mxu0 0.0
    %128 = vmatpush2.msra.mxu0 0.0
    %129 = vmatprep.subr.mxu0 0.0
    %130 = vmatpush2.msra.mxu0 0.0
    %131 = vmatprep.mubr.f32.mxu0 0.0
    %132 = vmatmul.mubr.f32.gmra.mxu0 %v62
    %v133 = vpop.f32.mrf.mxu0
    %v134 = vadd.f32 %v58, %v133
    %v135 = vpop.f32.mrf.mxu0
    %136 = vmatprep.mubr.f32.mxu0 0.0
    %137 = vmatmul.mubr.f32.gmra.mxu0 %v65
    %v138 = vpop.f32.mrf.mxu0
    %v139 = vadd.f32 %v58, %v138
    %v140 = vpop.f32.mrf.mxu0
    %141 = vdwg.mxu0
    %v142 = vsel %vm60, %v134, 0.0
    %143 = vadd.xlane.f32.xlu0 %v142
    %v144 = vpop.xlane.xlu0 %143
    %v145 = vsel %vm60, %v139, 0.0
    %146 = vadd.xlane.f32.xlu0 %v145
    %v147 = vpop.xlane.xlu0 %146
    %v148 = vrcp.pop 32.0
    %v149 = vmul.f32 %v144, %v148
    %v150 = vmul.f32 %v147, %v148
    %v151 = vsub.f32 %v134, %v149
    %v152 = vsub.f32 %v139, %v150
    %v153 = vmul.f32 %v151, %v151
    %v154 = vmul.f32 %v152, %v152
    %v155 = vsel %vm60, %v153, 0.0
    %156 = vadd.xlane.f32.xlu0 %v155
    %v157 = vpop.xlane.xlu0 %156
    %v158 = vsel %vm60, %v154, 0.0
    %159 = vadd.xlane.f32.xlu0 %v158
    %v160 = vpop.xlane.xlu0 %159
    %v161 = vmul.f32 %v157, %v148
    %v162 = vmul.f32 %v160, %v148
    %v163 = vadd.f32 %v161, 1e-05
    %v164 = vadd.f32 %v162, 1e-05
    %v165 = vrsqrt.pop %v163
    %v166 = vrsqrt.pop %v164
    %v167 = vmul.f32 %v151, %v165
    %v168 = vmul.f32 %v152, %v166
    %v170 = vlaneseq
    %v171 = vshrl.u32 %v170, 7
    %v172 = vsub.s32 0, %v171
    %v173 = vrot.slane %v52, %v172
    %v175 = vmul.f32 %v167, %v173
    %v176 = vmul.f32 %v168, %v173
    %v178 = vlaneseq
    %v179 = vshrl.u32 %v178, 7
    %v180 = vsub.s32 0, %v179
    %v181 = vrot.slane %v53, %v180
    %v183 = vadd.f32 %v175, %v181
    %v184 = vadd.f32 %v176, %v181
    %v185 = vmul.f32 %v183, 0.5
    %v186 = vmul.f32 %v184, 0.5
    %v187 = vmul.f32 %v183, 0.70710677
    %v188 = vmul.f32 %v184, 0.70710677
    %v189 = verf.f32.pop %v187
    %v190 = verf.f32.pop %v188
    %v191 = vadd.f32 %v189, 1.0
    %v192 = vadd.f32 %v190, 1.0
    %v193 = vmul.f32 %v185, %v191
    %v194 = vmul.f32 %v186, %v192
    %v195 = vld [vmem:[%s6] sm:$0x1]
    %v196 = vld [vmem:[#allocation2] sm:$0x1]
    %198 = vset.pattern.permute.xlu0 0
    %199 = vperm.xlu0 %198, %v196
    %v200 = vpop.permute.xlu0 %199
    %v202 = vlaneseq
    %v203 = vshrl.u32 %v202, 7
    %v204 = vsub.s32 0, %v203
    %v205 = vrot.slane %v200, %v204
    %v207 = vsel %vm60, %v195, 0
    %v210 = vsel %vm60, %v193, 0
    %v213 = vsel %vm60, %v194, 0
    %215 = vmatprep.subr.mxu0 0.0
    %216 = vmatpush1.xpose.msra.mxu0 0.0
    %217 = vmatprep.subr.mxu0 0.0
    %218 = vmatpush1.xpose.msra.mxu0 0.0
    %219 = vmatprep.subr.mxu0 0.0
    %220 = vmatpush1.xpose.msra.mxu0 0.0
    %221 = vmatprep.subr.mxu0 0.0
    %222 = vmatpush1.xpose.msra.mxu0 0.0
    %223 = vmatprep.subr.mxu0 0.0
    %224 = vmatpush1.xpose.msra.mxu0 0.0
    %225 = vmatprep.subr.mxu0 0.0
    %226 = vmatpush1.xpose.msra.mxu0 0.0
    %227 = vmatprep.subr.mxu0 0.0
    %228 = vmatpush1.xpose.msra.mxu0 0.0
    %229 = vmatprep.subr.mxu0 0.0
    %230 = vmatpush1.xpose.msra.mxu0 0.0
    %231 = vmatprep.subr.mxu0 0.0
    %232 = vmatpush1.xpose.msra.mxu0 0.0
    %233 = vmatprep.subr.mxu0 0.0
    %234 = vmatpush1.xpose.msra.mxu0 0.0
    %235 = vmatprep.subr.mxu0 0.0
    %236 = vmatpush1.xpose.msra.mxu0 0.0
    %237 = vmatprep.subr.mxu0 0.0
    %238 = vmatpush1.xpose.msra.mxu0 0.0
    %239 = vmatprep.subr.mxu0 0.0
    %240 = vmatpush1.xpose.msra.mxu0 0.0
    %241 = vmatprep.subr.mxu0 0.0
    %242 = vmatpush1.xpose.msra.mxu0 0.0
    %243 = vmatprep.subr.mxu0 0.0
    %244 = vmatpush1.xpose.msra.mxu0 %v213
    %245 = vmatprep.subr.mxu0 0.0
    %246 = vmatpush1.xpose.msra.mxu0 %v210
    %247 = vmatprep.subr.mxu0 0.0
    %248 = vmatpush2.xpose.msra.mxu0 0.0
    %249 = vmatprep.subr.mxu0 0.0
    %250 = vmatpush2.xpose.msra.mxu0 0.0
    %251 = vmatprep.subr.mxu0 0.0
    %252 = vmatpush2.xpose.msra.mxu0 0.0
    %253 = vmatprep.subr.mxu0 0.0
    %254 = vmatpush2.xpose.msra.mxu0 0.0
    %255 = vmatprep.subr.mxu0 0.0
    %256 = vmatpush2.xpose.msra.mxu0 0.0
    %257 = vmatprep.subr.mxu0 0.0
    %258 = vmatpush2.xpose.msra.mxu0 0.0
    %259 = vmatprep.subr.mxu0 0.0
    %260 = vmatpush2.xpose.msra.mxu0 0.0
    %261 = vmatprep.subr.mxu0 0.0
    %262 = vmatpush2.xpose.msra.mxu0 0.0
    %263 = vmatprep.subr.mxu0 0.0
    %264 = vmatpush2.xpose.msra.mxu0 0.0
    %265 = vmatprep.subr.mxu0 0.0
    %266 = vmatpush2.xpose.msra.mxu0 0.0
    %267 = vmatprep.subr.mxu0 0.0
    %268 = vmatpush2.xpose.msra.mxu0 0.0
    %269 = vmatprep.subr.mxu0 0.0
    %270 = vmatpush2.xpose.msra.mxu0 0.0
    %271 = vmatprep.subr.mxu0 0.0
    %272 = vmatpush2.xpose.msra.mxu0 0.0
    %273 = vmatprep.subr.mxu0 0.0
    %274 = vmatpush2.xpose.msra.mxu0 0.0
    %275 = vmatprep.subr.mxu0 0.0
    %276 = vmatpush2.xpose.msra.mxu0 0.0
    %277 = vmatprep.subr.mxu0 0.0
    %278 = vmatpush2.xpose.msra.mxu0 0.0
    %279 = vmatprep.mubr.f32.mxu0 0.0
    %280 = vmatmul.mubr.f32.gmra.mxu0 %v207
    %v281 = vpop.f32.mrf.mxu0
    %v282 = vadd.f32 %v205, %v281
    %v283 = vpop.f32.mrf.mxu0
    %284 = vdwg.mxu0
    %v285 = vxor.u32 %v282, 2147483648
    %v286 = vmul.f32 %v285, 1.442695
    %v287 = vpow.pop %v286
    %v288 = vadd.f32 %v287, 1.0
    %v289 = vrcp.pop %v288
    %v290 = vmul.f32 1.0, %v289
    %v291 = vld [vmem:[%s1] sm:$0x1]
    %v292 = vmul.f32 %v290, %v291
    %vm293 = vcmask 122880
    %294 = vst.msk [vmem:[%s8] sm:$0x1] %vm293, %v292
    // Predicated region
    $region38: #{_score_tokens.1} parent=1 // pred_check
      _
    $region39: #{_score_tokens.1} parent=1 // pred_check_branch
      %296 = sbr.rel (0) target = $region41
    $region40: #{_score_tokens.1} parent=1 // pred_region
      _
    $region41: #{_score_tokens.1} parent=1 // pred_fallthru
      _
    // Predicated region
    $region42: #{_score_tokens.1} parent=1 // pred_check
      _
    $region43: #{_score_tokens.1} parent=1 // pred_check_branch
      %298 = sbr.rel (0) target = $region45
    $region44: #{_score_tokens.1} parent=1 // pred_region
      _
    $region45: #{_score_tokens.1} parent=1 // pred_fallthru
      _
    %299 = vsyncpa [#allocation4], 1

</llo_original>
